<compile_context>
chip_gen: v6e
topology: v6e:2x2x1
jax: 0.10.0
libtpu: 0.0.40
codegen_flags: <defaults>
</compile_context>

<pallas_src>
import jax
import jax.numpy as jnp
from jax.experimental import pallas as pl
from jax.experimental.pallas import tpu as pltpu

HIDDEN_UNITS = [128, 64, 32]


def _round_up(x, m):
    return ((x + m - 1) // m) * m


def _value_mlp_kernel(x_ref,
                      w0_ref, b0_ref,
                      w1_ref, b1_ref,
                      w2_ref, b2_ref,
                      w3_ref, b3_ref,
                      out_ref):
    cdt = w0_ref.dtype  # MXU input dtype (bf16 by default, f32 for testing)

    # In-kernel cast of the f32 input tile (saves a full HBM copy vs casting
    # in the wrapper; VALU has plenty of slack in this mem-bound kernel).
    x = x_ref[...].astype(cdt)

    # Layer 0: Linear(input_dim -> 128) + ReLU   (f32 accumulate / bias / ReLU)
    h = jnp.dot(x, w0_ref[...], preferred_element_type=jnp.float32)
    h = jnp.maximum(h + b0_ref[...], 0.0)

    # Layer 1: Linear(128 -> 64) + ReLU
    h = jnp.dot(h.astype(cdt), w1_ref[...], preferred_element_type=jnp.float32)
    h = jnp.maximum(h + b1_ref[...], 0.0)

    # Layer 2: Linear(64 -> 32) + ReLU
    h = jnp.dot(h.astype(cdt), w2_ref[...], preferred_element_type=jnp.float32)
    h = jnp.maximum(h + b2_ref[...], 0.0)

    # Head: Linear(32 -> 1).  Plain h @ w3 -> (batch_tile, 1); the masked
    # 1-lane store is ~4*batch_tile bytes/step and avoids any XLU transpose.
    v = jnp.dot(h.astype(cdt), w3_ref[...], preferred_element_type=jnp.float32)
    out_ref[...] = (v + b3_ref[...]).astype(out_ref.dtype)


def _select_batch_tile(B):
    """Large tile (<=2048, multiple of 128) that still yields >=2 grid steps
    when B is big enough (v7x megacore gets both TensorCores)."""
    half = -(-B // 2)                       # cdiv(B, 2)
    tile = _round_up(max(half, 1), 128)
    return max(128, min(2048, tile))


def value_model_forward(state, params, *, batch_tile=None,
                        compute_dtype=jnp.bfloat16):
    """Fused ValueModel MLP via pallas_call.

    state:  (B, input_dim) float32
    params: list of (W, b) with W shaped (in, out), b shaped (out,) or (1, out)
    returns (B, 1) float32
    """
    B, input_dim = state.shape
    (w0, b0), (w1, b1), (w2, b2), (w3, b3) = params

    # ---- batch tile selection (multiple of 128, no input padding) ----
    if batch_tile is None:
        batch_tile = _select_batch_tile(B)
    batch_tile = max(128, _round_up(int(batch_tile), 128))
    num_tiles = pl.cdiv(B, batch_tile)
    padded_out = num_tiles * batch_tile      # output slab only; input unpadded

    # ---- parameter prep: bf16 weights for the MXU, f32 bias rows (tiny) ----
    w0c = w0.astype(compute_dtype)
    w1c = w1.astype(compute_dtype)
    w2c = w2.astype(compute_dtype)
    w3c = jnp.reshape(w3, (-1, 1)).astype(compute_dtype)    # (32, 1)
    b0r = jnp.reshape(b0, (1, -1)).astype(jnp.float32)
    b1r = jnp.reshape(b1, (1, -1)).astype(jnp.float32)
    b2r = jnp.reshape(b2, (1, -1)).astype(jnp.float32)
    b3r = jnp.reshape(b3, (1, 1)).astype(jnp.float32)

    # ---- explicit VMEM budget (double-buffered f32 input + resident weights) ----
    w_item = jnp.dtype(compute_dtype).itemsize
    weight_bytes = sum(int(w.size) * w_item for w in (w0c, w1c, w2c, w3c))
    bias_bytes = sum(int(b.size) * 4 for b in (b0r, b1r, b2r, b3r))
    in_tile_bytes = batch_tile * input_dim * 4               # f32 input stream
    out_tile_bytes = batch_tile * 4
    act_bytes = batch_tile * max(HIDDEN_UNITS) * 4           # largest f32 activation
    est = (weight_bytes + bias_bytes + 2 * (in_tile_bytes + out_tile_bytes)
           + 8 * act_bytes + (2 << 20))
    vmem_limit = int(min(max(est, 8 << 20), 48 << 20))       # v7x-safe headroom

    def _full(arr):
        nd = arr.ndim
        return pl.BlockSpec(arr.shape, lambda i, _nd=nd: (0,) * _nd)

    out = pl.pallas_call(
        _value_mlp_kernel,
        out_shape=jax.ShapeDtypeStruct((padded_out, 1), jnp.float32),
        grid_spec=pltpu.PrefetchScalarGridSpec(
            num_scalar_prefetch=0,
            grid=(num_tiles,),
            in_specs=[
                pl.BlockSpec((batch_tile, input_dim), lambda i: (i, 0)),
                _full(w0c), _full(b0r),
                _full(w1c), _full(b1r),
                _full(w2c), _full(b2r),
                _full(w3c), _full(b3r),
            ],
            out_specs=pl.BlockSpec((batch_tile, 1), lambda i: (i, 0)),
        ),
        compiler_params=pltpu.CompilerParams(
            dimension_semantics=("parallel",),
            vmem_limit_bytes=vmem_limit,
        ),
    )(state.astype(jnp.float32), w0c, b0r, w1c, b1r, w2c, b2r, w3c, b3r)

    # Drop the tile-padded tail rows (trailing input block was partial; its
    # garbage rows are row-independent and discarded here).
    return out[:B]


def init_value_model_params(key, input_dim, hidden_units=HIDDEN_UNITS):
    """Deterministic synthetic init (PyTorch-style uniform fan-in scaling).

    Weights are stored as (in, out) == transpose of torch's (out, in)."""
    dims = [input_dim] + list(hidden_units) + [1]
    params = []
    for fan_in, fan_out in zip(dims[:-1], dims[1:]):
        key, kw, kb = jax.random.split(key, 3)
        bound = 1.0 / jnp.sqrt(jnp.float32(fan_in))
        w = jax.random.uniform(kw, (fan_in, fan_out), jnp.float32, -bound, bound)
        b = jax.random.uniform(kb, (1, fan_out), jnp.float32, -bound, bound)
        params.append((w, b))
    return params


def value_model_reference(state, params, compute_dtype=jnp.float32):
    """Pure-JAX reference with the same mixed-precision scheme as the kernel."""
    h = state.astype(compute_dtype)
    for w, b in params[:-1]:
        acc = jnp.dot(h, w.astype(compute_dtype),
                      preferred_element_type=jnp.float32)
        h = jnp.maximum(acc + jnp.reshape(b, (1, -1)).astype(jnp.float32), 0.0)
        h = h.astype(compute_dtype)
    w, b = params[-1]
    acc = jnp.dot(h, w.astype(compute_dtype), preferred_element_type=jnp.float32)
    return acc + jnp.reshape(b, (1, -1)).astype(jnp.float32)


if __name__ == "__main__":
    key = jax.random.PRNGKey(0)
    batch, input_dim = 500, 32   # 500 is deliberately not tile-aligned

    k_params, k_state = jax.random.split(key)
    params = init_value_model_params(k_params, input_dim)
    state = jax.random.normal(k_state, (batch, input_dim), jnp.float32)

    # f32 compute path (tight numerical check), explicit tile -> 4 grid steps
    # with a partial trailing input block.
    v_f32 = jax.block_until_ready(
        value_model_forward(state, params, batch_tile=128,
                            compute_dtype=jnp.float32))
    r_f32 = value_model_reference(state, params, compute_dtype=jnp.float32)
    assert v_f32.shape == (batch, 1)
    assert jnp.allclose(v_f32, r_f32, atol=2e-3, rtol=2e-3), "f32 mismatch"

    # Default bf16-MXU path (f32 accumulation), auto tile (256 -> 2 grid steps).
    v_bf16 = jax.block_until_ready(value_model_forward(state, params))
    r_bf16 = value_model_reference(state, params, compute_dtype=jnp.bfloat16)
    assert v_bf16.shape == (batch, 1)
    assert jnp.allclose(v_bf16, r_bf16, atol=5e-2, rtol=5e-2), "bf16 mismatch"

    print("KERNEL_OK")
</pallas_src>

<mosaic_0001>
module attributes {stable_mosaic.version = 11 : i64} {
  func.func @_value_mlp_kernel(%arg0: i32, %arg1: memref<128x32xf32, #tpu.memory_space<vmem>>, %arg2: memref<32x128xf32, #tpu.memory_space<vmem>>, %arg3: memref<1x128xf32, #tpu.memory_space<vmem>>, %arg4: memref<128x64xf32, #tpu.memory_space<vmem>>, %arg5: memref<1x64xf32, #tpu.memory_space<vmem>>, %arg6: memref<64x32xf32, #tpu.memory_space<vmem>>, %arg7: memref<1x32xf32, #tpu.memory_space<vmem>>, %arg8: memref<32x1xf32, #tpu.memory_space<vmem>>, %arg9: memref<1x1xf32, #tpu.memory_space<vmem>>, %arg10: memref<128x1xf32, #tpu.memory_space<vmem>>) attributes {dimension_semantics = [#tpu.dimension_semantics<parallel>], iteration_bounds = array<i64: 4>, scalar_prefetch = 0 : i64, scratch_operands = 0 : i64, tpu.core_type = #tpu.core_type<tc>, window_params = [{transform_indices = @transform_0, window_bounds = array<i64: 128, 32>}, {pipeline_mode = #tpu.pipeline_mode<synchronous>, transform_indices = @transform_1, window_bounds = array<i64: 32, 128>}, {pipeline_mode = #tpu.pipeline_mode<synchronous>, transform_indices = @transform_2, window_bounds = array<i64: 1, 128>}, {pipeline_mode = #tpu.pipeline_mode<synchronous>, transform_indices = @transform_3, window_bounds = array<i64: 128, 64>}, {pipeline_mode = #tpu.pipeline_mode<synchronous>, transform_indices = @transform_4, window_bounds = array<i64: 1, 64>}, {pipeline_mode = #tpu.pipeline_mode<synchronous>, transform_indices = @transform_5, window_bounds = array<i64: 64, 32>}, {pipeline_mode = #tpu.pipeline_mode<synchronous>, transform_indices = @transform_6, window_bounds = array<i64: 1, 32>}, {pipeline_mode = #tpu.pipeline_mode<synchronous>, transform_indices = @transform_7, window_bounds = array<i64: 32, 1>}, {pipeline_mode = #tpu.pipeline_mode<synchronous>, transform_indices = @transform_8, window_bounds = array<i64: 1, 1>}, {transform_indices = @transform_9, window_bounds = array<i64: 128, 1>}]} {
    %c0 = arith.constant 0 : index
    %c0_0 = arith.constant 0 : index
    %0 = vector.load %arg1[%c0, %c0_0] : memref<128x32xf32, #tpu.memory_space<vmem>>, vector<128x32xf32>
    %c0_1 = arith.constant 0 : index
    %c0_2 = arith.constant 0 : index
    %1 = vector.load %arg2[%c0_1, %c0_2] : memref<32x128xf32, #tpu.memory_space<vmem>>, vector<32x128xf32>
    %cst = arith.constant dense<0.000000e+00> : vector<128x128xf32>
    %2 = tpu.matmul %0, %1, %cst {dimension_numbers = #tpu.dot_dimension_numbers<[1], [0], [0], [1], [0, 0, 1, 1], [], []>} : vector<128x32xf32>, vector<32x128xf32>, vector<128x128xf32> -> vector<128x128xf32>
    %c0_3 = arith.constant 0 : index
    %c0_4 = arith.constant 0 : index
    %3 = vector.load %arg3[%c0_3, %c0_4] : memref<1x128xf32, #tpu.memory_space<vmem>>, vector<1x128xf32>
    %4 = vector.broadcast %3 : vector<1x128xf32> to vector<128x128xf32>
    %5 = arith.addf %2, %4 : vector<128x128xf32>
    %cst_5 = arith.constant 0.000000e+00 : f32
    %6 = vector.broadcast %cst_5 : f32 to vector<128x128xf32>
    %7 = arith.maximumf %5, %6 : vector<128x128xf32>
    %c0_6 = arith.constant 0 : index
    %c0_7 = arith.constant 0 : index
    %8 = vector.load %arg4[%c0_6, %c0_7] : memref<128x64xf32, #tpu.memory_space<vmem>>, vector<128x64xf32>
    %cst_8 = arith.constant dense<0.000000e+00> : vector<128x64xf32>
    %9 = tpu.matmul %7, %8, %cst_8 {dimension_numbers = #tpu.dot_dimension_numbers<[1], [0], [0], [1], [0, 0, 1, 1], [], []>} : vector<128x128xf32>, vector<128x64xf32>, vector<128x64xf32> -> vector<128x64xf32>
    %c0_9 = arith.constant 0 : index
    %c0_10 = arith.constant 0 : index
    %10 = vector.load %arg5[%c0_9, %c0_10] : memref<1x64xf32, #tpu.memory_space<vmem>>, vector<1x64xf32>
    %11 = vector.broadcast %10 : vector<1x64xf32> to vector<128x64xf32>
    %12 = arith.addf %9, %11 : vector<128x64xf32>
    %cst_11 = arith.constant 0.000000e+00 : f32
    %13 = vector.broadcast %cst_11 : f32 to vector<128x64xf32>
    %14 = arith.maximumf %12, %13 : vector<128x64xf32>
    %c0_12 = arith.constant 0 : index
    %c0_13 = arith.constant 0 : index
    %15 = vector.load %arg6[%c0_12, %c0_13] : memref<64x32xf32, #tpu.memory_space<vmem>>, vector<64x32xf32>
    %cst_14 = arith.constant dense<0.000000e+00> : vector<128x32xf32>
    %16 = tpu.matmul %14, %15, %cst_14 {dimension_numbers = #tpu.dot_dimension_numbers<[1], [0], [0], [1], [0, 0, 1, 1], [], []>} : vector<128x64xf32>, vector<64x32xf32>, vector<128x32xf32> -> vector<128x32xf32>
    %c0_15 = arith.constant 0 : index
    %c0_16 = arith.constant 0 : index
    %17 = vector.load %arg7[%c0_15, %c0_16] : memref<1x32xf32, #tpu.memory_space<vmem>>, vector<1x32xf32>
    %18 = vector.broadcast %17 : vector<1x32xf32> to vector<128x32xf32>
    %19 = arith.addf %16, %18 : vector<128x32xf32>
    %cst_17 = arith.constant 0.000000e+00 : f32
    %20 = vector.broadcast %cst_17 : f32 to vector<128x32xf32>
    %21 = arith.maximumf %19, %20 : vector<128x32xf32>
    %c0_18 = arith.constant 0 : index
    %c0_19 = arith.constant 0 : index
    %22 = vector.load %arg8[%c0_18, %c0_19] : memref<32x1xf32, #tpu.memory_space<vmem>>, vector<32x1xf32>
    %cst_20 = arith.constant dense<0.000000e+00> : vector<128x1xf32>
    %23 = tpu.matmul %21, %22, %cst_20 {dimension_numbers = #tpu.dot_dimension_numbers<[1], [0], [0], [1], [0, 0, 1, 1], [], []>} : vector<128x32xf32>, vector<32x1xf32>, vector<128x1xf32> -> vector<128x1xf32>
    %c0_21 = arith.constant 0 : index
    %c0_22 = arith.constant 0 : index
    %24 = vector.load %arg9[%c0_21, %c0_22] : memref<1x1xf32, #tpu.memory_space<vmem>>, vector<1x1xf32>
    %25 = vector.broadcast %24 : vector<1x1xf32> to vector<128x1xf32>
    %26 = arith.addf %23, %25 : vector<128x1xf32>
    %c0_23 = arith.constant 0 : index
    %c0_24 = arith.constant 0 : index
    %27 = vector.load %arg10[%c0_23, %c0_24] : memref<128x1xf32, #tpu.memory_space<vmem>>, vector<128x1xf32>
    tpu.vector_store %arg10[%c0_23, %c0_24], %26 {strides = array<i32>} : memref<128x1xf32, #tpu.memory_space<vmem>>, vector<128x1xf32>,
    return
  }
  func.func @transform_0(%arg0: i32) -> (i32, i32) {
    %c0_i32 = arith.constant 0 : i32
    %c0_i32_0 = arith.constant 0 : i32
    return %arg0, %c0_i32 : i32, i32
  }
  func.func @transform_1(%arg0: i32) -> (i32, i32) {
    %c0_i32 = arith.constant 0 : i32
    %c0_i32_0 = arith.constant 0 : i32
    %c0_i32_1 = arith.constant 0 : i32
    return %c0_i32, %c0_i32_0 : i32, i32
  }
  func.func @transform_2(%arg0: i32) -> (i32, i32) {
    %c0_i32 = arith.constant 0 : i32
    %c0_i32_0 = arith.constant 0 : i32
    %c0_i32_1 = arith.constant 0 : i32
    return %c0_i32, %c0_i32_0 : i32, i32
  }
  func.func @transform_3(%arg0: i32) -> (i32, i32) {
    %c0_i32 = arith.constant 0 : i32
    %c0_i32_0 = arith.constant 0 : i32
    %c0_i32_1 = arith.constant 0 : i32
    return %c0_i32, %c0_i32_0 : i32, i32
  }
  func.func @transform_4(%arg0: i32) -> (i32, i32) {
    %c0_i32 = arith.constant 0 : i32
    %c0_i32_0 = arith.constant 0 : i32
    %c0_i32_1 = arith.constant 0 : i32
    return %c0_i32, %c0_i32_0 : i32, i32
  }
  func.func @transform_5(%arg0: i32) -> (i32, i32) {
    %c0_i32 = arith.constant 0 : i32
    %c0_i32_0 = arith.constant 0 : i32
    %c0_i32_1 = arith.constant 0 : i32
    return %c0_i32, %c0_i32_0 : i32, i32
  }
  func.func @transform_6(%arg0: i32) -> (i32, i32) {
    %c0_i32 = arith.constant 0 : i32
    %c0_i32_0 = arith.constant 0 : i32
    %c0_i32_1 = arith.constant 0 : i32
    return %c0_i32, %c0_i32_0 : i32, i32
  }
  func.func @transform_7(%arg0: i32) -> (i32, i32) {
    %c0_i32 = arith.constant 0 : i32
    %c0_i32_0 = arith.constant 0 : i32
    %c0_i32_1 = arith.constant 0 : i32
    return %c0_i32, %c0_i32_0 : i32, i32
  }
  func.func @transform_8(%arg0: i32) -> (i32, i32) {
    %c0_i32 = arith.constant 0 : i32
    %c0_i32_0 = arith.constant 0 : i32
    %c0_i32_1 = arith.constant 0 : i32
    return %c0_i32, %c0_i32_0 : i32, i32
  }
  func.func @transform_9(%arg0: i32) -> (i32, i32) {
    %c0_i32 = arith.constant 0 : i32
    %c0_i32_0 = arith.constant 0 : i32
    return %arg0, %c0_i32 : i32, i32
  }
}

</mosaic_0001>

<llo_original>
// kernel: tpu_custom_call.1
$region0: #{tpu_custom_call.1}
  #allocation0 [shape = 'u32[]', space=smem, size = 0x4, offset = 0x4, fixed_abs, tag = 'smem constant byte address 0x4 - core index']
  #allocation1 [shape = 'u32[144,128]{1,0:T(1,128)}', space=vmem, size = 0x12000, scoped, tag = 'internal scratch']
  #allocation2 [shape = 'f32[1,1]{1,0:T(1,128)S(1)}', space=vmem, size = 0x200, scoped, tag = 'scoped memory for tpu_custom_call.1']
  %s0 = inlined_call_operand.vmem [shape: f32[500,32], index: 0, kind: input, shape index: {}]
  %s1 = inlined_call_operand.vmem [shape: f32[32,128], index: 1, kind: input, shape index: {}]
  %s2 = inlined_call_operand.vmem [shape: f32[1,128], index: 2, kind: input, shape index: {}]
  %s3 = inlined_call_operand.vmem [shape: f32[128,64], index: 3, kind: input, shape index: {}]
  %s4 = inlined_call_operand.vmem [shape: f32[1,64], index: 4, kind: input, shape index: {}]
  %s5 = inlined_call_operand.vmem [shape: f32[64,32], index: 5, kind: input, shape index: {}]
  %s6 = inlined_call_operand.vmem [shape: f32[1,32], index: 6, kind: input, shape index: {}]
  %s7 = inlined_call_operand.vmem [shape: f32[32,1], index: 7, kind: input, shape index: {}]
  %s8 = inlined_call_operand.<no memory space> [shape: f32[1,1], index: 8, kind: input, shape index: {}]
  %s9 = inlined_call_operand.vmem [shape: f32[512,1], index: 9, kind: output, shape index: {}]
  %s10 = sld [smem:[#allocation0]]
  $region69: #{tpu_custom_call.1} parent=0
    _
  %s12 = ssub.s32 1, %s10
  %s13 = scalar_select 0, %s12, %s10
  %v14 = vstv %s8
  %15 = vst [vmem:[#allocation2] sm:$0x1] %v14
  loop: start=0, step=1, limit=6
  $region2: #{tpu_custom_call.1} parent=0 // loop_pre_header
    _
  $region3: #{tpu_custom_call.1} parent=0 // loop_header
    %s17 = sphi 0, %s21
    %p18 = scmp.ge.s32.totalorder %s17, 6
    %s27 = sphi 0, %s29
    %s30 = sphi 0, %s27
    %s31 = sphi 0, %s30
    %s47 = sphi 0, %s31
    %s51 = sphi 0, %s51
    %s53 = sphi 0, %s51
    %s54 = sphi 0, %s53
    %s68 = sphi 0, %s54
    %s72 = sphi 0, %s72
    %s74 = sphi 0, %s72
    %s75 = sphi 0, %s74
    %s89 = sphi 0, %s75
    %s93 = sphi 0, %s93
    %s95 = sphi 0, %s93
    %s96 = sphi 0, %s95
    %s110 = sphi 0, %s96
    %s114 = sphi 0, %s114
    %s116 = sphi 0, %s114
    %s117 = sphi 0, %s116
    %s131 = sphi 0, %s117
    %s135 = sphi 0, %s135
    %s137 = sphi 0, %s135
    %s138 = sphi 0, %s137
    %s152 = sphi 0, %s138
    %s156 = sphi 0, %s156
    %s158 = sphi 0, %s156
    %s159 = sphi 0, %s158
    %s173 = sphi 0, %s159
    %s177 = sphi 0, %s177
    %s179 = sphi 0, %s177
    %s180 = sphi 0, %s179
    %s194 = sphi 0, %s180
    %s198 = sphi 0, %s198
    %s200 = sphi 0, %s198
    %s201 = sphi 0, %s200
    %s215 = sphi 0, %s201
    %s221 = sphi 0, %s223
    %s224 = sphi 0, %s221
    %s225 = sphi 0, %s224
    %s241 = sphi 0, %s225
  $region4: #{tpu_custom_call.1} parent=0 // loop_header_branch
    %20 = sbr.rel (%p18) target = $region8
  $region5: #{tpu_custom_call.1} parent=0 // loop_body
    %s22 = ssub.s32 %s17, 1
    %s23 = ssub.s32 %s17, 2
    %s24 = sadd.s32 %s17, 1
    %s25 = ssub.s32 %s17, %s24
    %p26 = scmp.eq.s32.totalorder %s25, 0
    %s28 = sadd.s32 %s27, 1
    %s29 = scalar_select %p26, %s27, %s28
    %p32 = pneg %p26
    %p33 = scmp.eq.s32.totalorder %s17, 3
    %p34 = por %p32, %p33
    %p35 = scmp.ne.s32.totalorder %s27, %s30
    %p36 = scmp.eq.s32.totalorder %s17, 0
    %p37 = por %p35, %p36
    %p38 = scmp.ne.s32.totalorder %s27, %s30
    %p39 = scmp.eq.s32.totalorder %s22, 3
    %p40 = por %p38, %p39
    %p41 = scmp.ne.s32.totalorder %s30, %s31
    %p42 = scmp.eq.s32.totalorder %s22, 0
    %p43 = por %p41, %p42
    %p44 = scmp.ne.s32.totalorder %s30, %s31
    %p45 = scmp.eq.s32.totalorder %s23, 3
    %p46 = por %p44, %p45
    %p48 = scmp.ne.s32.totalorder %s31, %s47
    %p49 = scmp.eq.s32.totalorder %s23, 0
    %p50 = por %p48, %p49
    %s52 = sadd.s32 %s51, 1
    %p55 = scmp.eq.s32.totalorder %s17, 3
    %p56 = scmp.ne.s32.totalorder %s51, %s53
    %p57 = scmp.eq.s32.totalorder %s17, 0
    %p58 = por %p56, %p57
    %p59 = scmp.ne.s32.totalorder %s51, %s53
    %p60 = scmp.eq.s32.totalorder %s22, 3
    %p61 = por %p59, %p60
    %p62 = scmp.ne.s32.totalorder %s53, %s54
    %p63 = scmp.eq.s32.totalorder %s22, 0
    %p64 = por %p62, %p63
    %p65 = scmp.ne.s32.totalorder %s53, %s54
    %p66 = scmp.eq.s32.totalorder %s23, 3
    %p67 = por %p65, %p66
    %p69 = scmp.ne.s32.totalorder %s54, %s68
    %p70 = scmp.eq.s32.totalorder %s23, 0
    %p71 = por %p69, %p70
    %s73 = sadd.s32 %s72, 1
    %p76 = scmp.eq.s32.totalorder %s17, 3
    %p77 = scmp.ne.s32.totalorder %s72, %s74
    %p78 = scmp.eq.s32.totalorder %s17, 0
    %p79 = por %p77, %p78
    %p80 = scmp.ne.s32.totalorder %s72, %s74
    %p81 = scmp.eq.s32.totalorder %s22, 3
    %p82 = por %p80, %p81
    %p83 = scmp.ne.s32.totalorder %s74, %s75
    %p84 = scmp.eq.s32.totalorder %s22, 0
    %p85 = por %p83, %p84
    %p86 = scmp.ne.s32.totalorder %s74, %s75
    %p87 = scmp.eq.s32.totalorder %s23, 3
    %p88 = por %p86, %p87
    %p90 = scmp.ne.s32.totalorder %s75, %s89
    %p91 = scmp.eq.s32.totalorder %s23, 0
    %p92 = por %p90, %p91
    %s94 = sadd.s32 %s93, 1
    %p97 = scmp.eq.s32.totalorder %s17, 3
    %p98 = scmp.ne.s32.totalorder %s93, %s95
    %p99 = scmp.eq.s32.totalorder %s17, 0
    %p100 = por %p98, %p99
    %p101 = scmp.ne.s32.totalorder %s93, %s95
    %p102 = scmp.eq.s32.totalorder %s22, 3
    %p103 = por %p101, %p102
    %p104 = scmp.ne.s32.totalorder %s95, %s96
    %p105 = scmp.eq.s32.totalorder %s22, 0
    %p106 = por %p104, %p105
    %p107 = scmp.ne.s32.totalorder %s95, %s96
    %p108 = scmp.eq.s32.totalorder %s23, 3
    %p109 = por %p107, %p108
    %p111 = scmp.ne.s32.totalorder %s96, %s110
    %p112 = scmp.eq.s32.totalorder %s23, 0
    %p113 = por %p111, %p112
    %s115 = sadd.s32 %s114, 1
    %p118 = scmp.eq.s32.totalorder %s17, 3
    %p119 = scmp.ne.s32.totalorder %s114, %s116
    %p120 = scmp.eq.s32.totalorder %s17, 0
    %p121 = por %p119, %p120
    %p122 = scmp.ne.s32.totalorder %s114, %s116
    %p123 = scmp.eq.s32.totalorder %s22, 3
    %p124 = por %p122, %p123
    %p125 = scmp.ne.s32.totalorder %s116, %s117
    %p126 = scmp.eq.s32.totalorder %s22, 0
    %p127 = por %p125, %p126
    %p128 = scmp.ne.s32.totalorder %s116, %s117
    %p129 = scmp.eq.s32.totalorder %s23, 3
    %p130 = por %p128, %p129
    %p132 = scmp.ne.s32.totalorder %s117, %s131
    %p133 = scmp.eq.s32.totalorder %s23, 0
    %p134 = por %p132, %p133
    %s136 = sadd.s32 %s135, 1
    %p139 = scmp.eq.s32.totalorder %s17, 3
    %p140 = scmp.ne.s32.totalorder %s135, %s137
    %p141 = scmp.eq.s32.totalorder %s17, 0
    %p142 = por %p140, %p141
    %p143 = scmp.ne.s32.totalorder %s135, %s137
    %p144 = scmp.eq.s32.totalorder %s22, 3
    %p145 = por %p143, %p144
    %p146 = scmp.ne.s32.totalorder %s137, %s138
    %p147 = scmp.eq.s32.totalorder %s22, 0
    %p148 = por %p146, %p147
    %p149 = scmp.ne.s32.totalorder %s137, %s138
    %p150 = scmp.eq.s32.totalorder %s23, 3
    %p151 = por %p149, %p150
    %p153 = scmp.ne.s32.totalorder %s138, %s152
    %p154 = scmp.eq.s32.totalorder %s23, 0
    %p155 = por %p153, %p154
    %s157 = sadd.s32 %s156, 1
    %p160 = scmp.eq.s32.totalorder %s17, 3
    %p161 = scmp.ne.s32.totalorder %s156, %s158
    %p162 = scmp.eq.s32.totalorder %s17, 0
    %p163 = por %p161, %p162
    %p164 = scmp.ne.s32.totalorder %s156, %s158
    %p165 = scmp.eq.s32.totalorder %s22, 3
    %p166 = por %p164, %p165
    %p167 = scmp.ne.s32.totalorder %s158, %s159
    %p168 = scmp.eq.s32.totalorder %s22, 0
    %p169 = por %p167, %p168
    %p170 = scmp.ne.s32.totalorder %s158, %s159
    %p171 = scmp.eq.s32.totalorder %s23, 3
    %p172 = por %p170, %p171
    %p174 = scmp.ne.s32.totalorder %s159, %s173
    %p175 = scmp.eq.s32.totalorder %s23, 0
    %p176 = por %p174, %p175
    %s178 = sadd.s32 %s177, 1
    %p181 = scmp.eq.s32.totalorder %s17, 3
    %p182 = scmp.ne.s32.totalorder %s177, %s179
    %p183 = scmp.eq.s32.totalorder %s17, 0
    %p184 = por %p182, %p183
    %p185 = scmp.ne.s32.totalorder %s177, %s179
    %p186 = scmp.eq.s32.totalorder %s22, 3
    %p187 = por %p185, %p186
    %p188 = scmp.ne.s32.totalorder %s179, %s180
    %p189 = scmp.eq.s32.totalorder %s22, 0
    %p190 = por %p188, %p189
    %p191 = scmp.ne.s32.totalorder %s179, %s180
    %p192 = scmp.eq.s32.totalorder %s23, 3
    %p193 = por %p191, %p192
    %p195 = scmp.ne.s32.totalorder %s180, %s194
    %p196 = scmp.eq.s32.totalorder %s23, 0
    %p197 = por %p195, %p196
    %s199 = sadd.s32 %s198, 1
    %p202 = scmp.eq.s32.totalorder %s17, 3
    %p203 = scmp.ne.s32.totalorder %s198, %s200
    %p204 = scmp.eq.s32.totalorder %s17, 0
    %p205 = por %p203, %p204
    %p206 = scmp.ne.s32.totalorder %s198, %s200
    %p207 = scmp.eq.s32.totalorder %s22, 3
    %p208 = por %p206, %p207
    %p209 = scmp.ne.s32.totalorder %s200, %s201
    %p210 = scmp.eq.s32.totalorder %s22, 0
    %p211 = por %p209, %p210
    %p212 = scmp.ne.s32.totalorder %s200, %s201
    %p213 = scmp.eq.s32.totalorder %s23, 3
    %p214 = por %p212, %p213
    %p216 = scmp.ne.s32.totalorder %s201, %s215
    %p217 = scmp.eq.s32.totalorder %s23, 0
    %p218 = por %p216, %p217
    %s219 = ssub.s32 %s17, %s24
    %p220 = scmp.eq.s32.totalorder %s219, 0
    %s222 = sadd.s32 %s221, 1
    %s223 = scalar_select %p220, %s221, %s222
    %p226 = pneg %p220
    %p227 = scmp.eq.s32.totalorder %s17, 3
    %p228 = por %p226, %p227
    %p229 = scmp.ne.s32.totalorder %s221, %s224
    %p230 = scmp.eq.s32.totalorder %s17, 0
    %p231 = por %p229, %p230
    %p232 = scmp.ne.s32.totalorder %s221, %s224
    %p233 = scmp.eq.s32.totalorder %s22, 3
    %p234 = por %p232, %p233
    %p235 = scmp.ne.s32.totalorder %s224, %s225
    %p236 = scmp.eq.s32.totalorder %s22, 0
    %p237 = por %p235, %p236
    %p238 = scmp.ne.s32.totalorder %s224, %s225
    %p239 = scmp.eq.s32.totalorder %s23, 3
    %p240 = por %p238, %p239
    %p242 = scmp.ne.s32.totalorder %s225, %s241
    %p243 = scmp.eq.s32.totalorder %s23, 0
    %p244 = por %p242, %p243
    %p245 = scmp.le.s32.totalorder 1, %s17
    %p246 = scmp.lt.s32.totalorder %s17, 5
    %p247 = pnand %p245, %p246
    %p248 = pneg %p247
    // Predicated region
    $region9: #{tpu_custom_call.1} parent=5 // pred_check
      _
    $region10: #{tpu_custom_call.1} parent=5 // pred_check_branch
      %250 = sbr.rel (%p247) target = $region12
    $region11: #{tpu_custom_call.1} parent=5 // pred_region
      %s251 = ssub.s32 %s17, 1
      // Predicated region
      $region13: #{tpu_custom_call.1} parent=11 // pred_check
        %p252 = pneg %p64
      $region14: #{tpu_custom_call.1} parent=11 // pred_check_branch
        %254 = sbr.rel (%p252) target = $region16
      $region15: #{tpu_custom_call.1} parent=11 // pred_region
        _
      $region16: #{tpu_custom_call.1} parent=11 // pred_fallthru
        _
      // Predicated region
      $region17: #{tpu_custom_call.1} parent=11 // pred_check
        %p255 = pneg %p85
      $region18: #{tpu_custom_call.1} parent=11 // pred_check_branch
        %257 = sbr.rel (%p255) target = $region20
      $region19: #{tpu_custom_call.1} parent=11 // pred_region
        _
      $region20: #{tpu_custom_call.1} parent=11 // pred_fallthru
        _
      // Predicated region
      $region21: #{tpu_custom_call.1} parent=11 // pred_check
        %p258 = pneg %p106
      $region22: #{tpu_custom_call.1} parent=11 // pred_check_branch
        %260 = sbr.rel (%p258) target = $region24
      $region23: #{tpu_custom_call.1} parent=11 // pred_region
        _
      $region24: #{tpu_custom_call.1} parent=11 // pred_fallthru
        _
      // Predicated region
      $region25: #{tpu_custom_call.1} parent=11 // pred_check
        %p261 = pneg %p127
      $region26: #{tpu_custom_call.1} parent=11 // pred_check_branch
        %263 = sbr.rel (%p261) target = $region28
      $region27: #{tpu_custom_call.1} parent=11 // pred_region
        _
      $region28: #{tpu_custom_call.1} parent=11 // pred_fallthru
        _
      // Predicated region
      $region29: #{tpu_custom_call.1} parent=11 // pred_check
        %p264 = pneg %p148
      $region30: #{tpu_custom_call.1} parent=11 // pred_check_branch
        %266 = sbr.rel (%p264) target = $region32
      $region31: #{tpu_custom_call.1} parent=11 // pred_region
        _
      $region32: #{tpu_custom_call.1} parent=11 // pred_fallthru
        _
      // Predicated region
      $region33: #{tpu_custom_call.1} parent=11 // pred_check
        %p267 = pneg %p169
      $region34: #{tpu_custom_call.1} parent=11 // pred_check_branch
        %269 = sbr.rel (%p267) target = $region36
      $region35: #{tpu_custom_call.1} parent=11 // pred_region
        _
      $region36: #{tpu_custom_call.1} parent=11 // pred_fallthru
        _
      // Predicated region
      $region37: #{tpu_custom_call.1} parent=11 // pred_check
        %p270 = pneg %p190
      $region38: #{tpu_custom_call.1} parent=11 // pred_check_branch
        %272 = sbr.rel (%p270) target = $region40
      $region39: #{tpu_custom_call.1} parent=11 // pred_region
        _
      $region40: #{tpu_custom_call.1} parent=11 // pred_fallthru
        _
      // Predicated region
      $region41: #{tpu_custom_call.1} parent=11 // pred_check
        %p273 = pneg %p211
      $region42: #{tpu_custom_call.1} parent=11 // pred_check_branch
        %275 = sbr.rel (%p273) target = $region44
      $region43: #{tpu_custom_call.1} parent=11 // pred_region
        _
      $region44: #{tpu_custom_call.1} parent=11 // pred_fallthru
        _
    $region12: #{tpu_custom_call.1} parent=5 // pred_fallthru
      _
    %p276 = scmp.lt.s32.totalorder %s17, 4
    // Predicated region
    $region45: #{tpu_custom_call.1} parent=5 // pred_check
      %p277 = pneg %p276
    $region46: #{tpu_custom_call.1} parent=5 // pred_check_branch
      %279 = sbr.rel (%p277) target = $region48
    $region47: #{tpu_custom_call.1} parent=5 // pred_region
      // Predicated region
      $region49: #{tpu_custom_call.1} parent=47 // pred_check
        %p280 = pneg %p37
      $region50: #{tpu_custom_call.1} parent=47 // pred_check_branch
        %282 = sbr.rel (%p280) target = $region52
      $region51: #{tpu_custom_call.1} parent=47 // pred_region
        %s283 = smul.u32 16, %s17
        %s284 = ssub.s32 63, %s283
        %p285 = scmp.lt.s32.totalorder %s284, 16
        %s286 = scalar_select %p285, %s284, 16
        %s287 = smul.u32 128, %s286
        %p288 = scmp.lt.s32.totalorder %s283, 62
        %s289 = scalar_select %p288, %s283, 62
        %s290 = smul.addr %s289, 8
        %s291 = scalar_lea.vmem %s0, %s290
        %s292 = smul.u32 16, %s17
        %s293 = ssub.s32 63, %s292
        %p294 = scmp.lt.s32.totalorder %s293, 16
        %s295 = scalar_select %p294, %s293, 16
        %s296 = smul.u32 128, %s295
      $region52: #{tpu_custom_call.1} parent=47 // pred_fallthru
        _
    $region48: #{tpu_custom_call.1} parent=5 // pred_fallthru
      _
    %p297 = scmp.le.s32.totalorder 1, %s17
    %p298 = scmp.lt.s32.totalorder %s17, 5
    %p299 = pnand %p297, %p298
    %p300 = pneg %p299
    // Predicated region
    $region53: #{tpu_custom_call.1} parent=5 // pred_check
      _
    $region54: #{tpu_custom_call.1} parent=5 // pred_check_branch
      %302 = sbr.rel (%p299) target = $region56
    $region55: #{tpu_custom_call.1} parent=5 // pred_region
      %s303 = ssub.s32 %s17, 1
      %s304 = smul.u32 16, %s22
      %s305 = ssub.s32 63, %s304
      %p306 = scmp.lt.s32.totalorder %s305, 16
      %s307 = scalar_select %p306, %s305, 16
      %s308 = smul.u32 128, %s307
      %p309 = scmp.lt.s32.totalorder %s304, 62
      %s310 = scalar_select %p309, %s304, 62
      %s311 = smul.addr %s310, 8
      %s312 = scalar_lea.vmem %s0, %s311
      %p313 = pneg %p43
      %p314 = pneg %p40
      %p315 = pneg %p64
      %p316 = pneg %p61
      %p317 = pneg %p85
      %p318 = pneg %p82
      %p319 = pneg %p106
      %p320 = pneg %p103
      %p321 = pneg %p127
      %p322 = pneg %p124
      %p323 = pneg %p148
      %p324 = pneg %p145
      %p325 = pneg %p169
      %p326 = pneg %p166
      %p327 = pneg %p190
      %p328 = pneg %p187
      %p329 = pneg %p211
      %p330 = pneg %p208
      %p331 = pneg %p237
      %p332 = pneg %p234
      %s333 = smul.u32 16, %s22
      %p334 = scmp.lt.s32.totalorder %s333, 63
      %s335 = scalar_select %p334, %s333, 63
      %s336 = smul.addr %s335, 8
      %s337 = scalar_lea.vmem %s9, %s336
      %s338 = smul.u32 16, %s22
      %s339 = ssub.s32 63, %s338
      %p340 = scmp.lt.s32.totalorder %s339, 16
      %s341 = scalar_select %p340, %s339, 16
      %s342 = smul.u32 128, %s341
      %p343 = scmp.lt.s32.totalorder %s338, 62
      %s344 = scalar_select %p343, %s338, 62
      %s345 = smul.addr %s344, 8
      %s346 = scalar_lea.vmem %s0, %s345
      %s347 = smul.u32 16, %s22
      %s348 = ssub.s32 63, %s347
      %p349 = scmp.lt.s32.totalorder %s348, 16
      %s350 = scalar_select %p349, %s348, 16
      %s351 = smul.u32 128, %s350
      %s352 = smul.u32 16, %s22
      %p353 = scmp.lt.s32.totalorder %s352, 63
      %s354 = scalar_select %p353, %s352, 63
      %s355 = smul.addr %s354, 8
      %s356 = scalar_lea.vmem %s9, %s355
      %s357 = smul.u32 16, %s22
      %v358 = vld [vmem:[%s346] sm:$0xff]
      %v359 = vld [vmem:[%s346 + $0x8] sm:$0xff]
      %v360 = vld [vmem:[%s346 + $0x10] sm:$0xff]
      %v361 = vld [vmem:[%s346 + $0x18] sm:$0xff]
      %v362 = vld [vmem:[%s346 + $0x20] sm:$0xff]
      %v363 = vld [vmem:[%s346 + $0x28] sm:$0xff]
      %v364 = vld [vmem:[%s346 + $0x30] sm:$0xff]
      %v365 = vld [vmem:[%s346 + $0x38] sm:$0xff]
      %v366 = vld [vmem:[%s346 + $0x40] sm:$0xff]
      %v367 = vld [vmem:[%s346 + $0x48] sm:$0xff]
      %v368 = vld [vmem:[%s346 + $0x50] sm:$0xff]
      %v369 = vld [vmem:[%s346 + $0x58] sm:$0xff]
      %v370 = vld [vmem:[%s346 + $0x60] sm:$0xff]
      %v371 = vld [vmem:[%s346 + $0x68] sm:$0xff]
      %v372 = vld [vmem:[%s346 + $0x70] sm:$0xff]
      %v373 = vld [vmem:[%s346 + $0x78] sm:$0xff]
      %v374 = vld [vmem:[%s1] sm:$0xff]
      %v375 = vld [vmem:[%s1 + $0x8] sm:$0xff]
      %v376 = vld [vmem:[%s1 + $0x10] sm:$0xff]
      %v377 = vld [vmem:[%s1 + $0x18] sm:$0xff]
      %v378 = vld [vmem:[%s2] sm:$0x1]
      %v380 = vlaneseq
      %v381 = vshrl.u32 %v380, 7
      %v382 = vsub.s32 0, %v381
      %v383 = vrot.slane %v378, %v382
      %vm385 = vcmask 261120
      %v387 = vsel %vm385, %v358, 0
      %v390 = vsel %vm385, %v359, 0
      %v393 = vsel %vm385, %v360, 0
      %v396 = vsel %vm385, %v361, 0
      %v399 = vsel %vm385, %v362, 0
      %v402 = vsel %vm385, %v363, 0
      %v405 = vsel %vm385, %v364, 0
      %v408 = vsel %vm385, %v365, 0
      %v411 = vsel %vm385, %v366, 0
      %v414 = vsel %vm385, %v367, 0
      %v417 = vsel %vm385, %v368, 0
      %v420 = vsel %vm385, %v369, 0
      %v423 = vsel %vm385, %v370, 0
      %v426 = vsel %vm385, %v371, 0
      %v429 = vsel %vm385, %v372, 0
      %v432 = vsel %vm385, %v373, 0
      %434 = vmatprep.subr.mxu0 0.0
      %435 = vmatpush1.msra.mxu0 0.0
      %436 = vmatprep.subr.mxu0 0.0
      %437 = vmatpush1.msra.mxu0 0.0
      %438 = vmatprep.subr.mxu0 0.0
      %439 = vmatpush1.msra.mxu0 0.0
      %440 = vmatprep.subr.mxu0 0.0
      %441 = vmatpush1.msra.mxu0 0.0
      %442 = vmatprep.subr.mxu0 0.0
      %443 = vmatpush1.msra.mxu0 0.0
      %444 = vmatprep.subr.mxu0 0.0
      %445 = vmatpush1.msra.mxu0 0.0
      %446 = vmatprep.subr.mxu0 0.0
      %447 = vmatpush1.msra.mxu0 0.0
      %448 = vmatprep.subr.mxu0 0.0
      %449 = vmatpush1.msra.mxu0 0.0
      %450 = vmatprep.subr.mxu0 0.0
      %451 = vmatpush1.msra.mxu0 0.0
      %452 = vmatprep.subr.mxu0 0.0
      %453 = vmatpush1.msra.mxu0 0.0
      %454 = vmatprep.subr.mxu0 0.0
      %455 = vmatpush1.msra.mxu0 0.0
      %456 = vmatprep.subr.mxu0 0.0
      %457 = vmatpush1.msra.mxu0 0.0
      %458 = vmatprep.subr.mxu0 0.0
      %459 = vmatpush1.msra.mxu0 %v377
      %460 = vmatprep.subr.mxu0 0.0
      %461 = vmatpush1.msra.mxu0 %v376
      %462 = vmatprep.subr.mxu0 0.0
      %463 = vmatpush1.msra.mxu0 %v375
      %464 = vmatprep.subr.mxu0 0.0
      %465 = vmatpush1.msra.mxu0 %v374
      %466 = vmatprep.subr.mxu0 0.0
      %467 = vmatpush2.msra.mxu0 0.0
      %468 = vmatprep.subr.mxu0 0.0
      %469 = vmatpush2.msra.mxu0 0.0
      %470 = vmatprep.subr.mxu0 0.0
      %471 = vmatpush2.msra.mxu0 0.0
      %472 = vmatprep.subr.mxu0 0.0
      %473 = vmatpush2.msra.mxu0 0.0
      %474 = vmatprep.subr.mxu0 0.0
      %475 = vmatpush2.msra.mxu0 0.0
      %476 = vmatprep.subr.mxu0 0.0
      %477 = vmatpush2.msra.mxu0 0.0
      %478 = vmatprep.subr.mxu0 0.0
      %479 = vmatpush2.msra.mxu0 0.0
      %480 = vmatprep.subr.mxu0 0.0
      %481 = vmatpush2.msra.mxu0 0.0
      %482 = vmatprep.subr.mxu0 0.0
      %483 = vmatpush2.msra.mxu0 0.0
      %484 = vmatprep.subr.mxu0 0.0
      %485 = vmatpush2.msra.mxu0 0.0
      %486 = vmatprep.subr.mxu0 0.0
      %487 = vmatpush2.msra.mxu0 0.0
      %488 = vmatprep.subr.mxu0 0.0
      %489 = vmatpush2.msra.mxu0 0.0
      %490 = vmatprep.subr.mxu0 0.0
      %491 = vmatpush2.msra.mxu0 0.0
      %492 = vmatprep.subr.mxu0 0.0
      %493 = vmatpush2.msra.mxu0 0.0
      %494 = vmatprep.subr.mxu0 0.0
      %495 = vmatpush2.msra.mxu0 0.0
      %496 = vmatprep.subr.mxu0 0.0
      %497 = vmatpush2.msra.mxu0 0.0
      %498 = vmatprep.mubr.f32.mxu0 0.0
      %499 = vmatmul.mubr.f32.gmra.mxu0 %v387
      %v500 = vpop.f32.mrf.mxu0
      %v501 = vadd.f32 %v383, %v500
      %v502 = vpop.f32.mrf.mxu0
      %503 = vmatprep.mubr.f32.mxu0 0.0
      %504 = vmatmul.mubr.f32.gmra.mxu0 %v390
      %v505 = vpop.f32.mrf.mxu0
      %v506 = vadd.f32 %v383, %v505
      %v507 = vpop.f32.mrf.mxu0
      %508 = vmatprep.mubr.f32.mxu0 0.0
      %509 = vmatmul.mubr.f32.gmra.mxu0 %v393
      %v510 = vpop.f32.mrf.mxu0
      %v511 = vadd.f32 %v383, %v510
      %v512 = vpop.f32.mrf.mxu0
      %513 = vmatprep.mubr.f32.mxu0 0.0
      %514 = vmatmul.mubr.f32.gmra.mxu0 %v396
      %v515 = vpop.f32.mrf.mxu0
      %v516 = vadd.f32 %v383, %v515
      %v517 = vpop.f32.mrf.mxu0
      %518 = vmatprep.mubr.f32.mxu0 0.0
      %519 = vmatmul.mubr.f32.gmra.mxu0 %v399
      %v520 = vpop.f32.mrf.mxu0
      %v521 = vadd.f32 %v383, %v520
      %v522 = vpop.f32.mrf.mxu0
      %523 = vmatprep.mubr.f32.mxu0 0.0
      %524 = vmatmul.mubr.f32.gmra.mxu0 %v402
      %v525 = vpop.f32.mrf.mxu0
      %v526 = vadd.f32 %v383, %v525
      %v527 = vpop.f32.mrf.mxu0
      %528 = vmatprep.mubr.f32.mxu0 0.0
      %529 = vmatmul.mubr.f32.gmra.mxu0 %v405
      %v530 = vpop.f32.mrf.mxu0
      %v531 = vadd.f32 %v383, %v530
      %v532 = vpop.f32.mrf.mxu0
      %533 = vmatprep.mubr.f32.mxu0 0.0
      %534 = vmatmul.mubr.f32.gmra.mxu0 %v408
      %v535 = vpop.f32.mrf.mxu0
      %v536 = vadd.f32 %v383, %v535
      %v537 = vpop.f32.mrf.mxu0
      %538 = vmatprep.mubr.f32.mxu0 0.0
      %539 = vmatmul.mubr.f32.gmra.mxu0 %v411
      %v540 = vpop.f32.mrf.mxu0
      %v541 = vadd.f32 %v383, %v540
      %v542 = vpop.f32.mrf.mxu0
      %543 = vmatprep.mubr.f32.mxu0 0.0
      %544 = vmatmul.mubr.f32.gmra.mxu0 %v414
      %v545 = vpop.f32.mrf.mxu0
      %v546 = vadd.f32 %v383, %v545
      %v547 = vpop.f32.mrf.mxu0
      %548 = vmatprep.mubr.f32.mxu0 0.0
      %549 = vmatmul.mubr.f32.gmra.mxu0 %v417
      %v550 = vpop.f32.mrf.mxu0
      %v551 = vadd.f32 %v383, %v550
      %v552 = vpop.f32.mrf.mxu0
      %553 = vmatprep.mubr.f32.mxu0 0.0
      %554 = vmatmul.mubr.f32.gmra.mxu0 %v420
      %v555 = vpop.f32.mrf.mxu0
      %v556 = vadd.f32 %v383, %v555
      %v557 = vpop.f32.mrf.mxu0
      %558 = vmatprep.mubr.f32.mxu0 0.0
      %559 = vmatmul.mubr.f32.gmra.mxu0 %v423
      %v560 = vpop.f32.mrf.mxu0
      %v561 = vadd.f32 %v383, %v560
      %v562 = vpop.f32.mrf.mxu0
      %563 = vmatprep.mubr.f32.mxu0 0.0
      %564 = vmatmul.mubr.f32.gmra.mxu0 %v426
      %v565 = vpop.f32.mrf.mxu0
      %v566 = vadd.f32 %v383, %v565
      %v567 = vpop.f32.mrf.mxu0
      %568 = vmatprep.mubr.f32.mxu0 0.0
      %569 = vmatmul.mubr.f32.gmra.mxu0 %v429
      %v570 = vpop.f32.mrf.mxu0
      %v571 = vadd.f32 %v383, %v570
      %v572 = vpop.f32.mrf.mxu0
      %573 = vmatprep.mubr.f32.mxu0 0.0
      %574 = vmatmul.mubr.f32.gmra.mxu0 %v432
      %v575 = vpop.f32.mrf.mxu0
      %v576 = vadd.f32 %v383, %v575
      %v577 = vpop.f32.mrf.mxu0
      %578 = vdwg.mxu0
      %v579 = vmax.f32 %v501, 0.0
      %v580 = vmax.f32 %v506, 0.0
      %v581 = vmax.f32 %v511, 0.0
      %v582 = vmax.f32 %v516, 0.0
      %v583 = vmax.f32 %v521, 0.0
      %v584 = vmax.f32 %v526, 0.0
      %v585 = vmax.f32 %v531, 0.0
      %v586 = vmax.f32 %v536, 0.0
      %v587 = vmax.f32 %v541, 0.0
      %v588 = vmax.f32 %v546, 0.0
      %v589 = vmax.f32 %v551, 0.0
      %v590 = vmax.f32 %v556, 0.0
      %v591 = vmax.f32 %v561, 0.0
      %v592 = vmax.f32 %v566, 0.0
      %v593 = vmax.f32 %v571, 0.0
      %v594 = vmax.f32 %v576, 0.0
      %v595 = vld [vmem:[%s3] sm:$0xff]
      %v596 = vld [vmem:[%s3 + $0x8] sm:$0xff]
      %v597 = vld [vmem:[%s3 + $0x10] sm:$0xff]
      %v598 = vld [vmem:[%s3 + $0x18] sm:$0xff]
      %v599 = vld [vmem:[%s3 + $0x20] sm:$0xff]
      %v600 = vld [vmem:[%s3 + $0x28] sm:$0xff]
      %v601 = vld [vmem:[%s3 + $0x30] sm:$0xff]
      %v602 = vld [vmem:[%s3 + $0x38] sm:$0xff]
      %v603 = vld [vmem:[%s3 + $0x40] sm:$0xff]
      %v604 = vld [vmem:[%s3 + $0x48] sm:$0xff]
      %v605 = vld [vmem:[%s3 + $0x50] sm:$0xff]
      %v606 = vld [vmem:[%s3 + $0x58] sm:$0xff]
      %v607 = vld [vmem:[%s3 + $0x60] sm:$0xff]
      %v608 = vld [vmem:[%s3 + $0x68] sm:$0xff]
      %v609 = vld [vmem:[%s3 + $0x70] sm:$0xff]
      %v610 = vld [vmem:[%s3 + $0x78] sm:$0xff]
      %v611 = vld [vmem:[%s4] sm:$0x1]
      %v613 = vlaneseq
      %v614 = vshrl.u32 %v613, 7
      %v615 = vsub.s32 0, %v614
      %v616 = vrot.slane %v611, %v615
      %618 = vmatprep.subr.mxu0 0.0
      %619 = vmatpush1.msra.mxu0 %v610
      %620 = vmatprep.subr.mxu0 0.0
      %621 = vmatpush1.msra.mxu0 %v609
      %622 = vmatprep.subr.mxu0 0.0
      %623 = vmatpush1.msra.mxu0 %v608
      %624 = vmatprep.subr.mxu0 0.0
      %625 = vmatpush1.msra.mxu0 %v607
      %626 = vmatprep.subr.mxu0 0.0
      %627 = vmatpush1.msra.mxu0 %v606
      %628 = vmatprep.subr.mxu0 0.0
      %629 = vmatpush1.msra.mxu0 %v605
      %630 = vmatprep.subr.mxu0 0.0
      %631 = vmatpush1.msra.mxu0 %v604
      %632 = vmatprep.subr.mxu0 0.0
      %633 = vmatpush1.msra.mxu0 %v603
      %634 = vmatprep.subr.mxu0 0.0
      %635 = vmatpush1.msra.mxu0 %v602
      %636 = vmatprep.subr.mxu0 0.0
      %637 = vmatpush1.msra.mxu0 %v601
      %638 = vmatprep.subr.mxu0 0.0
      %639 = vmatpush1.msra.mxu0 %v600
      %640 = vmatprep.subr.mxu0 0.0
      %641 = vmatpush1.msra.mxu0 %v599
      %642 = vmatprep.subr.mxu0 0.0
      %643 = vmatpush1.msra.mxu0 %v598
      %644 = vmatprep.subr.mxu0 0.0
      %645 = vmatpush1.msra.mxu0 %v597
      %646 = vmatprep.subr.mxu0 0.0
      %647 = vmatpush1.msra.mxu0 %v596
      %648 = vmatprep.subr.mxu0 0.0
      %649 = vmatpush1.msra.mxu0 %v595
      %650 = vmatprep.subr.mxu0 0.0
      %651 = vmatpush2.msra.mxu0 0.0
      %652 = vmatprep.subr.mxu0 0.0
      %653 = vmatpush2.msra.mxu0 0.0
      %654 = vmatprep.subr.mxu0 0.0
      %655 = vmatpush2.msra.mxu0 0.0
      %656 = vmatprep.subr.mxu0 0.0
      %657 = vmatpush2.msra.mxu0 0.0
      %658 = vmatprep.subr.mxu0 0.0
      %659 = vmatpush2.msra.mxu0 0.0
      %660 = vmatprep.subr.mxu0 0.0
      %661 = vmatpush2.msra.mxu0 0.0
      %662 = vmatprep.subr.mxu0 0.0
      %663 = vmatpush2.msra.mxu0 0.0
      %664 = vmatprep.subr.mxu0 0.0
      %665 = vmatpush2.msra.mxu0 0.0
      %666 = vmatprep.subr.mxu0 0.0
      %667 = vmatpush2.msra.mxu0 0.0
      %668 = vmatprep.subr.mxu0 0.0
      %669 = vmatpush2.msra.mxu0 0.0
      %670 = vmatprep.subr.mxu0 0.0
      %671 = vmatpush2.msra.mxu0 0.0
      %672 = vmatprep.subr.mxu0 0.0
      %673 = vmatpush2.msra.mxu0 0.0
      %674 = vmatprep.subr.mxu0 0.0
      %675 = vmatpush2.msra.mxu0 0.0
      %676 = vmatprep.subr.mxu0 0.0
      %677 = vmatpush2.msra.mxu0 0.0
      %678 = vmatprep.subr.mxu0 0.0
      %679 = vmatpush2.msra.mxu0 0.0
      %680 = vmatprep.subr.mxu0 0.0
      %681 = vmatpush2.msra.mxu0 0.0
      %682 = vmatprep.mubr.f32.mxu0 0.0
      %683 = vmatmul.mubr.f32.gmra.mxu0 %v579
      %v684 = vpop.f32.mrf.mxu0
      %v685 = vadd.f32 %v616, %v684
      %v686 = vpop.f32.mrf.mxu0
      %687 = vmatprep.mubr.f32.mxu0 0.0
      %688 = vmatmul.mubr.f32.gmra.mxu0 %v580
      %v689 = vpop.f32.mrf.mxu0
      %v690 = vadd.f32 %v616, %v689
      %v691 = vpop.f32.mrf.mxu0
      %692 = vmatprep.mubr.f32.mxu0 0.0
      %693 = vmatmul.mubr.f32.gmra.mxu0 %v581
      %v694 = vpop.f32.mrf.mxu0
      %v695 = vadd.f32 %v616, %v694
      %v696 = vpop.f32.mrf.mxu0
      %697 = vmatprep.mubr.f32.mxu0 0.0
      %698 = vmatmul.mubr.f32.gmra.mxu0 %v582
      %v699 = vpop.f32.mrf.mxu0
      %v700 = vadd.f32 %v616, %v699
      %v701 = vpop.f32.mrf.mxu0
      %702 = vmatprep.mubr.f32.mxu0 0.0
      %703 = vmatmul.mubr.f32.gmra.mxu0 %v583
      %v704 = vpop.f32.mrf.mxu0
      %v705 = vadd.f32 %v616, %v704
      %v706 = vpop.f32.mrf.mxu0
      %707 = vmatprep.mubr.f32.mxu0 0.0
      %708 = vmatmul.mubr.f32.gmra.mxu0 %v584
      %v709 = vpop.f32.mrf.mxu0
      %v710 = vadd.f32 %v616, %v709
      %v711 = vpop.f32.mrf.mxu0
      %712 = vmatprep.mubr.f32.mxu0 0.0
      %713 = vmatmul.mubr.f32.gmra.mxu0 %v585
      %v714 = vpop.f32.mrf.mxu0
      %v715 = vadd.f32 %v616, %v714
      %v716 = vpop.f32.mrf.mxu0
      %717 = vmatprep.mubr.f32.mxu0 0.0
      %718 = vmatmul.mubr.f32.gmra.mxu0 %v586
      %v719 = vpop.f32.mrf.mxu0
      %v720 = vadd.f32 %v616, %v719
      %v721 = vpop.f32.mrf.mxu0
      %722 = vmatprep.mubr.f32.mxu0 0.0
      %723 = vmatmul.mubr.f32.gmra.mxu0 %v587
      %v724 = vpop.f32.mrf.mxu0
      %v725 = vadd.f32 %v616, %v724
      %v726 = vpop.f32.mrf.mxu0
      %727 = vmatprep.mubr.f32.mxu0 0.0
      %728 = vmatmul.mubr.f32.gmra.mxu0 %v588
      %v729 = vpop.f32.mrf.mxu0
      %v730 = vadd.f32 %v616, %v729
      %v731 = vpop.f32.mrf.mxu0
      %732 = vmatprep.mubr.f32.mxu0 0.0
      %733 = vmatmul.mubr.f32.gmra.mxu0 %v589
      %v734 = vpop.f32.mrf.mxu0
      %v735 = vadd.f32 %v616, %v734
      %v736 = vpop.f32.mrf.mxu0
      %737 = vmatprep.mubr.f32.mxu0 0.0
      %738 = vmatmul.mubr.f32.gmra.mxu0 %v590
      %v739 = vpop.f32.mrf.mxu0
      %v740 = vadd.f32 %v616, %v739
      %v741 = vpop.f32.mrf.mxu0
      %742 = vmatprep.mubr.f32.mxu0 0.0
      %743 = vmatmul.mubr.f32.gmra.mxu0 %v591
      %v744 = vpop.f32.mrf.mxu0
      %v745 = vadd.f32 %v616, %v744
      %v746 = vpop.f32.mrf.mxu0
      %747 = vmatprep.mubr.f32.mxu0 0.0
      %748 = vmatmul.mubr.f32.gmra.mxu0 %v592
      %v749 = vpop.f32.mrf.mxu0
      %v750 = vadd.f32 %v616, %v749
      %v751 = vpop.f32.mrf.mxu0
      %752 = vmatprep.mubr.f32.mxu0 0.0
      %753 = vmatmul.mubr.f32.gmra.mxu0 %v593
      %v754 = vpop.f32.mrf.mxu0
      %v755 = vadd.f32 %v616, %v754
      %v756 = vpop.f32.mrf.mxu0
      %757 = vmatprep.mubr.f32.mxu0 0.0
      %758 = vmatmul.mubr.f32.gmra.mxu0 %v594
      %v759 = vpop.f32.mrf.mxu0
      %v760 = vadd.f32 %v616, %v759
      %v761 = vpop.f32.mrf.mxu0
      %762 = vdwg.mxu0
      %v763 = vmax.f32 %v685, 0.0
      %v764 = vmax.f32 %v690, 0.0
      %v765 = vmax.f32 %v695, 0.0
      %v766 = vmax.f32 %v700, 0.0
      %v767 = vmax.f32 %v705, 0.0
      %v768 = vmax.f32 %v710, 0.0
      %v769 = vmax.f32 %v715, 0.0
      %v770 = vmax.f32 %v720, 0.0
      %v771 = vmax.f32 %v725, 0.0
      %v772 = vmax.f32 %v730, 0.0
      %v773 = vmax.f32 %v735, 0.0
      %v774 = vmax.f32 %v740, 0.0
      %v775 = vmax.f32 %v745, 0.0
      %v776 = vmax.f32 %v750, 0.0
      %v777 = vmax.f32 %v755, 0.0
      %v778 = vmax.f32 %v760, 0.0
      %v779 = vld [vmem:[%s5] sm:$0xff]
      %v780 = vld [vmem:[%s5 + $0x8] sm:$0xff]
      %v781 = vld [vmem:[%s5 + $0x10] sm:$0xff]
      %v782 = vld [vmem:[%s5 + $0x18] sm:$0xff]
      %v783 = vld [vmem:[%s5 + $0x20] sm:$0xff]
      %v784 = vld [vmem:[%s5 + $0x28] sm:$0xff]
      %v785 = vld [vmem:[%s5 + $0x30] sm:$0xff]
      %v786 = vld [vmem:[%s5 + $0x38] sm:$0xff]
      %v787 = vld [vmem:[%s6] sm:$0x1]
      %v789 = vlaneseq
      %v790 = vshrl.u32 %v789, 7
      %v791 = vsub.s32 0, %v790
      %v792 = vrot.slane %v787, %v791
      %vm794 = vcmask 523264
      %v796 = vsel %vm794, %v763, 0
      %v799 = vsel %vm794, %v764, 0
      %v802 = vsel %vm794, %v765, 0
      %v805 = vsel %vm794, %v766, 0
      %v808 = vsel %vm794, %v767, 0
      %v811 = vsel %vm794, %v768, 0
      %v814 = vsel %vm794, %v769, 0
      %v817 = vsel %vm794, %v770, 0
      %v820 = vsel %vm794, %v771, 0
      %v823 = vsel %vm794, %v772, 0
      %v826 = vsel %vm794, %v773, 0
      %v829 = vsel %vm794, %v774, 0
      %v832 = vsel %vm794, %v775, 0
      %v835 = vsel %vm794, %v776, 0
      %v838 = vsel %vm794, %v777, 0
      %v841 = vsel %vm794, %v778, 0
      %843 = vmatprep.subr.mxu0 0.0
      %844 = vmatpush1.msra.mxu0 0.0
      %845 = vmatprep.subr.mxu0 0.0
      %846 = vmatpush1.msra.mxu0 0.0
      %847 = vmatprep.subr.mxu0 0.0
      %848 = vmatpush1.msra.mxu0 0.0
      %849 = vmatprep.subr.mxu0 0.0
      %850 = vmatpush1.msra.mxu0 0.0
      %851 = vmatprep.subr.mxu0 0.0
      %852 = vmatpush1.msra.mxu0 0.0
      %853 = vmatprep.subr.mxu0 0.0
      %854 = vmatpush1.msra.mxu0 0.0
      %855 = vmatprep.subr.mxu0 0.0
      %856 = vmatpush1.msra.mxu0 0.0
      %857 = vmatprep.subr.mxu0 0.0
      %858 = vmatpush1.msra.mxu0 0.0
      %859 = vmatprep.subr.mxu0 0.0
      %860 = vmatpush1.msra.mxu0 %v786
      %861 = vmatprep.subr.mxu0 0.0
      %862 = vmatpush1.msra.mxu0 %v785
      %863 = vmatprep.subr.mxu0 0.0
      %864 = vmatpush1.msra.mxu0 %v784
      %865 = vmatprep.subr.mxu0 0.0
      %866 = vmatpush1.msra.mxu0 %v783
      %867 = vmatprep.subr.mxu0 0.0
      %868 = vmatpush1.msra.mxu0 %v782
      %869 = vmatprep.subr.mxu0 0.0
      %870 = vmatpush1.msra.mxu0 %v781
      %871 = vmatprep.subr.mxu0 0.0
      %872 = vmatpush1.msra.mxu0 %v780
      %873 = vmatprep.subr.mxu0 0.0
      %874 = vmatpush1.msra.mxu0 %v779
      %875 = vmatprep.subr.mxu0 0.0
      %876 = vmatpush2.msra.mxu0 0.0
      %877 = vmatprep.subr.mxu0 0.0
      %878 = vmatpush2.msra.mxu0 0.0
      %879 = vmatprep.subr.mxu0 0.0
      %880 = vmatpush2.msra.mxu0 0.0
      %881 = vmatprep.subr.mxu0 0.0
      %882 = vmatpush2.msra.mxu0 0.0
      %883 = vmatprep.subr.mxu0 0.0
      %884 = vmatpush2.msra.mxu0 0.0
      %885 = vmatprep.subr.mxu0 0.0
      %886 = vmatpush2.msra.mxu0 0.0
      %887 = vmatprep.subr.mxu0 0.0
      %888 = vmatpush2.msra.mxu0 0.0
      %889 = vmatprep.subr.mxu0 0.0
      %890 = vmatpush2.msra.mxu0 0.0
      %891 = vmatprep.subr.mxu0 0.0
      %892 = vmatpush2.msra.mxu0 0.0
      %893 = vmatprep.subr.mxu0 0.0
      %894 = vmatpush2.msra.mxu0 0.0
      %895 = vmatprep.subr.mxu0 0.0
      %896 = vmatpush2.msra.mxu0 0.0
      %897 = vmatprep.subr.mxu0 0.0
      %898 = vmatpush2.msra.mxu0 0.0
      %899 = vmatprep.subr.mxu0 0.0
      %900 = vmatpush2.msra.mxu0 0.0
      %901 = vmatprep.subr.mxu0 0.0
      %902 = vmatpush2.msra.mxu0 0.0
      %903 = vmatprep.subr.mxu0 0.0
      %904 = vmatpush2.msra.mxu0 0.0
      %905 = vmatprep.subr.mxu0 0.0
      %906 = vmatpush2.msra.mxu0 0.0
      %907 = vmatprep.mubr.f32.mxu0 0.0
      %908 = vmatmul.mubr.f32.gmra.mxu0 %v796
      %v909 = vpop.f32.mrf.mxu0
      %v910 = vadd.f32 %v792, %v909
      %v911 = vpop.f32.mrf.mxu0
      %912 = vmatprep.mubr.f32.mxu0 0.0
      %913 = vmatmul.mubr.f32.gmra.mxu0 %v799
      %v914 = vpop.f32.mrf.mxu0
      %v915 = vadd.f32 %v792, %v914
      %v916 = vpop.f32.mrf.mxu0
      %917 = vmatprep.mubr.f32.mxu0 0.0
      %918 = vmatmul.mubr.f32.gmra.mxu0 %v802
      %v919 = vpop.f32.mrf.mxu0
      %v920 = vadd.f32 %v792, %v919
      %v921 = vpop.f32.mrf.mxu0
      %922 = vmatprep.mubr.f32.mxu0 0.0
      %923 = vmatmul.mubr.f32.gmra.mxu0 %v805
      %v924 = vpop.f32.mrf.mxu0
      %v925 = vadd.f32 %v792, %v924
      %v926 = vpop.f32.mrf.mxu0
      %927 = vmatprep.mubr.f32.mxu0 0.0
      %928 = vmatmul.mubr.f32.gmra.mxu0 %v808
      %v929 = vpop.f32.mrf.mxu0
      %v930 = vadd.f32 %v792, %v929
      %v931 = vpop.f32.mrf.mxu0
      %932 = vmatprep.mubr.f32.mxu0 0.0
      %933 = vmatmul.mubr.f32.gmra.mxu0 %v811
      %v934 = vpop.f32.mrf.mxu0
      %v935 = vadd.f32 %v792, %v934
      %v936 = vpop.f32.mrf.mxu0
      %937 = vmatprep.mubr.f32.mxu0 0.0
      %938 = vmatmul.mubr.f32.gmra.mxu0 %v814
      %v939 = vpop.f32.mrf.mxu0
      %v940 = vadd.f32 %v792, %v939
      %v941 = vpop.f32.mrf.mxu0
      %942 = vmatprep.mubr.f32.mxu0 0.0
      %943 = vmatmul.mubr.f32.gmra.mxu0 %v817
      %v944 = vpop.f32.mrf.mxu0
      %v945 = vadd.f32 %v792, %v944
      %v946 = vpop.f32.mrf.mxu0
      %947 = vmatprep.mubr.f32.mxu0 0.0
      %948 = vmatmul.mubr.f32.gmra.mxu0 %v820
      %v949 = vpop.f32.mrf.mxu0
      %v950 = vadd.f32 %v792, %v949
      %v951 = vpop.f32.mrf.mxu0
      %952 = vmatprep.mubr.f32.mxu0 0.0
      %953 = vmatmul.mubr.f32.gmra.mxu0 %v823
      %v954 = vpop.f32.mrf.mxu0
      %v955 = vadd.f32 %v792, %v954
      %v956 = vpop.f32.mrf.mxu0
      %957 = vmatprep.mubr.f32.mxu0 0.0
      %958 = vmatmul.mubr.f32.gmra.mxu0 %v826
      %v959 = vpop.f32.mrf.mxu0
      %v960 = vadd.f32 %v792, %v959
      %v961 = vpop.f32.mrf.mxu0
      %962 = vmatprep.mubr.f32.mxu0 0.0
      %963 = vmatmul.mubr.f32.gmra.mxu0 %v829
      %v964 = vpop.f32.mrf.mxu0
      %v965 = vadd.f32 %v792, %v964
      %v966 = vpop.f32.mrf.mxu0
      %967 = vmatprep.mubr.f32.mxu0 0.0
      %968 = vmatmul.mubr.f32.gmra.mxu0 %v832
      %v969 = vpop.f32.mrf.mxu0
      %v970 = vadd.f32 %v792, %v969
      %v971 = vpop.f32.mrf.mxu0
      %972 = vmatprep.mubr.f32.mxu0 0.0
      %973 = vmatmul.mubr.f32.gmra.mxu0 %v835
      %v974 = vpop.f32.mrf.mxu0
      %v975 = vadd.f32 %v792, %v974
      %v976 = vpop.f32.mrf.mxu0
      %977 = vmatprep.mubr.f32.mxu0 0.0
      %978 = vmatmul.mubr.f32.gmra.mxu0 %v838
      %v979 = vpop.f32.mrf.mxu0
      %v980 = vadd.f32 %v792, %v979
      %v981 = vpop.f32.mrf.mxu0
      %982 = vmatprep.mubr.f32.mxu0 0.0
      %983 = vmatmul.mubr.f32.gmra.mxu0 %v841
      %v984 = vpop.f32.mrf.mxu0
      %v985 = vadd.f32 %v792, %v984
      %v986 = vpop.f32.mrf.mxu0
      %987 = vdwg.mxu0
      %v988 = vmax.f32 %v910, 0.0
      %v989 = vmax.f32 %v915, 0.0
      %v990 = vmax.f32 %v920, 0.0
      %v991 = vmax.f32 %v925, 0.0
      %v992 = vmax.f32 %v930, 0.0
      %v993 = vmax.f32 %v935, 0.0
      %v994 = vmax.f32 %v940, 0.0
      %v995 = vmax.f32 %v945, 0.0
      %v996 = vmax.f32 %v950, 0.0
      %v997 = vmax.f32 %v955, 0.0
      %v998 = vmax.f32 %v960, 0.0
      %v999 = vmax.f32 %v965, 0.0
      %v1000 = vmax.f32 %v970, 0.0
      %v1001 = vmax.f32 %v975, 0.0
      %v1002 = vmax.f32 %v980, 0.0
      %v1003 = vmax.f32 %v985, 0.0
      %v1004 = vld [vmem:[%s7] sm:$0xff]
      %v1005 = vld [vmem:[%s7 + $0x8] sm:$0xff]
      %v1006 = vld [vmem:[%s7 + $0x10] sm:$0xff]
      %v1007 = vld [vmem:[%s7 + $0x18] sm:$0xff]
      %v1008 = vld [vmem:[#allocation2] sm:$0x1]
      %v1010 = vlaneseq
      %v1011 = vshrl.u32 %v1010, 7
      %v1012 = vsub.s32 0, %v1011
      %v1013 = vrot.slane %v1008, %v1012
      %v1016 = vsel %vm385, %v988, 0
      %v1019 = vsel %vm385, %v989, 0
      %v1022 = vsel %vm385, %v990, 0
      %v1025 = vsel %vm385, %v991, 0
      %v1028 = vsel %vm385, %v992, 0
      %v1031 = vsel %vm385, %v993, 0
      %v1034 = vsel %vm385, %v994, 0
      %v1037 = vsel %vm385, %v995, 0
      %v1040 = vsel %vm385, %v996, 0
      %v1043 = vsel %vm385, %v997, 0
      %v1046 = vsel %vm385, %v998, 0
      %v1049 = vsel %vm385, %v999, 0
      %v1052 = vsel %vm385, %v1000, 0
      %v1055 = vsel %vm385, %v1001, 0
      %v1058 = vsel %vm385, %v1002, 0
      %v1061 = vsel %vm385, %v1003, 0
      %1063 = vmatprep.subr.mxu0 0.0
      %1064 = vmatpush1.msra.mxu0 0.0
      %1065 = vmatprep.subr.mxu0 0.0
      %1066 = vmatpush1.msra.mxu0 0.0
      %1067 = vmatprep.subr.mxu0 0.0
      %1068 = vmatpush1.msra.mxu0 0.0
      %1069 = vmatprep.subr.mxu0 0.0
      %1070 = vmatpush1.msra.mxu0 0.0
      %1071 = vmatprep.subr.mxu0 0.0
      %1072 = vmatpush1.msra.mxu0 0.0
      %1073 = vmatprep.subr.mxu0 0.0
      %1074 = vmatpush1.msra.mxu0 0.0
      %1075 = vmatprep.subr.mxu0 0.0
      %1076 = vmatpush1.msra.mxu0 0.0
      %1077 = vmatprep.subr.mxu0 0.0
      %1078 = vmatpush1.msra.mxu0 0.0
      %1079 = vmatprep.subr.mxu0 0.0
      %1080 = vmatpush1.msra.mxu0 0.0
      %1081 = vmatprep.subr.mxu0 0.0
      %1082 = vmatpush1.msra.mxu0 0.0
      %1083 = vmatprep.subr.mxu0 0.0
      %1084 = vmatpush1.msra.mxu0 0.0
      %1085 = vmatprep.subr.mxu0 0.0
      %1086 = vmatpush1.msra.mxu0 0.0
      %1087 = vmatprep.subr.mxu0 0.0
      %1088 = vmatpush1.msra.mxu0 %v1007
      %1089 = vmatprep.subr.mxu0 0.0
      %1090 = vmatpush1.msra.mxu0 %v1006
      %1091 = vmatprep.subr.mxu0 0.0
      %1092 = vmatpush1.msra.mxu0 %v1005
      %1093 = vmatprep.subr.mxu0 0.0
      %1094 = vmatpush1.msra.mxu0 %v1004
      %1095 = vmatprep.subr.mxu0 0.0
      %1096 = vmatpush2.msra.mxu0 0.0
      %1097 = vmatprep.subr.mxu0 0.0
      %1098 = vmatpush2.msra.mxu0 0.0
      %1099 = vmatprep.subr.mxu0 0.0
      %1100 = vmatpush2.msra.mxu0 0.0
      %1101 = vmatprep.subr.mxu0 0.0
      %1102 = vmatpush2.msra.mxu0 0.0
      %1103 = vmatprep.subr.mxu0 0.0
      %1104 = vmatpush2.msra.mxu0 0.0
      %1105 = vmatprep.subr.mxu0 0.0
      %1106 = vmatpush2.msra.mxu0 0.0
      %1107 = vmatprep.subr.mxu0 0.0
      %1108 = vmatpush2.msra.mxu0 0.0
      %1109 = vmatprep.subr.mxu0 0.0
      %1110 = vmatpush2.msra.mxu0 0.0
      %1111 = vmatprep.subr.mxu0 0.0
      %1112 = vmatpush2.msra.mxu0 0.0
      %1113 = vmatprep.subr.mxu0 0.0
      %1114 = vmatpush2.msra.mxu0 0.0
      %1115 = vmatprep.subr.mxu0 0.0
      %1116 = vmatpush2.msra.mxu0 0.0
      %1117 = vmatprep.subr.mxu0 0.0
      %1118 = vmatpush2.msra.mxu0 0.0
      %1119 = vmatprep.subr.mxu0 0.0
      %1120 = vmatpush2.msra.mxu0 0.0
      %1121 = vmatprep.subr.mxu0 0.0
      %1122 = vmatpush2.msra.mxu0 0.0
      %1123 = vmatprep.subr.mxu0 0.0
      %1124 = vmatpush2.msra.mxu0 0.0
      %1125 = vmatprep.subr.mxu0 0.0
      %1126 = vmatpush2.msra.mxu0 0.0
      %1127 = vmatprep.mubr.f32.mxu0 0.0
      %1128 = vmatmul.mubr.f32.gmra.mxu0 %v1016
      %v1129 = vpop.f32.mrf.mxu0
      %v1130 = vadd.f32 %v1013, %v1129
      %v1131 = vpop.f32.mrf.mxu0
      %1132 = vmatprep.mubr.f32.mxu0 0.0
      %1133 = vmatmul.mubr.f32.gmra.mxu0 %v1019
      %v1134 = vpop.f32.mrf.mxu0
      %v1135 = vadd.f32 %v1013, %v1134
      %v1136 = vpop.f32.mrf.mxu0
      %1137 = vmatprep.mubr.f32.mxu0 0.0
      %1138 = vmatmul.mubr.f32.gmra.mxu0 %v1022
      %v1139 = vpop.f32.mrf.mxu0
      %v1140 = vadd.f32 %v1013, %v1139
      %v1141 = vpop.f32.mrf.mxu0
      %1142 = vmatprep.mubr.f32.mxu0 0.0
      %1143 = vmatmul.mubr.f32.gmra.mxu0 %v1025
      %v1144 = vpop.f32.mrf.mxu0
      %v1145 = vadd.f32 %v1013, %v1144
      %v1146 = vpop.f32.mrf.mxu0
      %1147 = vmatprep.mubr.f32.mxu0 0.0
      %1148 = vmatmul.mubr.f32.gmra.mxu0 %v1028
      %v1149 = vpop.f32.mrf.mxu0
      %v1150 = vadd.f32 %v1013, %v1149
      %v1151 = vpop.f32.mrf.mxu0
      %1152 = vmatprep.mubr.f32.mxu0 0.0
      %1153 = vmatmul.mubr.f32.gmra.mxu0 %v1031
      %v1154 = vpop.f32.mrf.mxu0
      %v1155 = vadd.f32 %v1013, %v1154
      %v1156 = vpop.f32.mrf.mxu0
      %1157 = vmatprep.mubr.f32.mxu0 0.0
      %1158 = vmatmul.mubr.f32.gmra.mxu0 %v1034
      %v1159 = vpop.f32.mrf.mxu0
      %v1160 = vadd.f32 %v1013, %v1159
      %v1161 = vpop.f32.mrf.mxu0
      %1162 = vmatprep.mubr.f32.mxu0 0.0
      %1163 = vmatmul.mubr.f32.gmra.mxu0 %v1037
      %v1164 = vpop.f32.mrf.mxu0
      %v1165 = vadd.f32 %v1013, %v1164
      %v1166 = vpop.f32.mrf.mxu0
      %1167 = vmatprep.mubr.f32.mxu0 0.0
      %1168 = vmatmul.mubr.f32.gmra.mxu0 %v1040
      %v1169 = vpop.f32.mrf.mxu0
      %v1170 = vadd.f32 %v1013, %v1169
      %v1171 = vpop.f32.mrf.mxu0
      %1172 = vmatprep.mubr.f32.mxu0 0.0
      %1173 = vmatmul.mubr.f32.gmra.mxu0 %v1043
      %v1174 = vpop.f32.mrf.mxu0
      %v1175 = vadd.f32 %v1013, %v1174
      %v1176 = vpop.f32.mrf.mxu0
      %1177 = vmatprep.mubr.f32.mxu0 0.0
      %1178 = vmatmul.mubr.f32.gmra.mxu0 %v1046
      %v1179 = vpop.f32.mrf.mxu0
      %v1180 = vadd.f32 %v1013, %v1179
      %v1181 = vpop.f32.mrf.mxu0
      %1182 = vmatprep.mubr.f32.mxu0 0.0
      %1183 = vmatmul.mubr.f32.gmra.mxu0 %v1049
      %v1184 = vpop.f32.mrf.mxu0
      %v1185 = vadd.f32 %v1013, %v1184
      %v1186 = vpop.f32.mrf.mxu0
      %1187 = vmatprep.mubr.f32.mxu0 0.0
      %1188 = vmatmul.mubr.f32.gmra.mxu0 %v1052
      %v1189 = vpop.f32.mrf.mxu0
      %v1190 = vadd.f32 %v1013, %v1189
      %v1191 = vpop.f32.mrf.mxu0
      %1192 = vmatprep.mubr.f32.mxu0 0.0
      %1193 = vmatmul.mubr.f32.gmra.mxu0 %v1055
      %v1194 = vpop.f32.mrf.mxu0
      %v1195 = vadd.f32 %v1013, %v1194
      %v1196 = vpop.f32.mrf.mxu0
      %1197 = vmatprep.mubr.f32.mxu0 0.0
      %1198 = vmatmul.mubr.f32.gmra.mxu0 %v1058
      %v1199 = vpop.f32.mrf.mxu0
      %v1200 = vadd.f32 %v1013, %v1199
      %v1201 = vpop.f32.mrf.mxu0
      %1202 = vmatprep.mubr.f32.mxu0 0.0
      %1203 = vmatmul.mubr.f32.gmra.mxu0 %v1061
      %v1204 = vpop.f32.mrf.mxu0
      %v1205 = vadd.f32 %v1013, %v1204
      %v1206 = vpop.f32.mrf.mxu0
      %1207 = vdwg.mxu0
      %vm1208 = vcmask 7168
      %1209 = vst.msk [vmem:[%s356] sm:$0xff] %vm1208, %v1130
      %1210 = vst.msk [vmem:[%s356 + $0x8] sm:$0xff] %vm1208, %v1135
      %1211 = vst.msk [vmem:[%s356 + $0x10] sm:$0xff] %vm1208, %v1140
      %1212 = vst.msk [vmem:[%s356 + $0x18] sm:$0xff] %vm1208, %v1145
      %1213 = vst.msk [vmem:[%s356 + $0x20] sm:$0xff] %vm1208, %v1150
      %1214 = vst.msk [vmem:[%s356 + $0x28] sm:$0xff] %vm1208, %v1155
      %1215 = vst.msk [vmem:[%s356 + $0x30] sm:$0xff] %vm1208, %v1160
      %1216 = vst.msk [vmem:[%s356 + $0x38] sm:$0xff] %vm1208, %v1165
      %1217 = vst.msk [vmem:[%s356 + $0x40] sm:$0xff] %vm1208, %v1170
      %1218 = vst.msk [vmem:[%s356 + $0x48] sm:$0xff] %vm1208, %v1175
      %1219 = vst.msk [vmem:[%s356 + $0x50] sm:$0xff] %vm1208, %v1180
      %1220 = vst.msk [vmem:[%s356 + $0x58] sm:$0xff] %vm1208, %v1185
      %1221 = vst.msk [vmem:[%s356 + $0x60] sm:$0xff] %vm1208, %v1190
      %1222 = vst.msk [vmem:[%s356 + $0x68] sm:$0xff] %vm1208, %v1195
      %1223 = vst.msk [vmem:[%s356 + $0x70] sm:$0xff] %vm1208, %v1200
      %1224 = vst.msk [vmem:[%s356 + $0x78] sm:$0xff] %vm1208, %v1205
      %s1225 = smul.u32 16, %s22
      %p1226 = scmp.lt.s32.totalorder %s1225, 63
      %s1227 = scalar_select %p1226, %s1225, 63
      %s1228 = smul.addr %s1227, 8
      %s1229 = scalar_lea.vmem %s9, %s1228
      // Predicated region
      $region57: #{tpu_custom_call.1} parent=55 // pred_check
        %p1230 = pneg %p234
      $region58: #{tpu_custom_call.1} parent=55 // pred_check_branch
        %1232 = sbr.rel (%p1230) target = $region60
      $region59: #{tpu_custom_call.1} parent=55 // pred_region
        %s1233 = smul.u32 16, %s22
      $region60: #{tpu_custom_call.1} parent=55 // pred_fallthru
        _
    $region56: #{tpu_custom_call.1} parent=5 // pred_fallthru
      _
    %p1234 = scmp.le.s32.totalorder 2, %s17
    // Predicated region
    $region61: #{tpu_custom_call.1} parent=5 // pred_check
      %p1235 = pneg %p1234
    $region62: #{tpu_custom_call.1} parent=5 // pred_check_branch
      %1237 = sbr.rel (%p1235) target = $region64
    $region63: #{tpu_custom_call.1} parent=5 // pred_region
      %s1238 = ssub.s32 %s17, 2
      // Predicated region
      $region65: #{tpu_custom_call.1} parent=63 // pred_check
        %p1239 = pneg %p240
      $region66: #{tpu_custom_call.1} parent=63 // pred_check_branch
        %1241 = sbr.rel (%p1239) target = $region68
      $region67: #{tpu_custom_call.1} parent=63 // pred_region
        %s1242 = smul.u32 16, %s23
        %p1243 = scmp.lt.s32.totalorder %s1242, 63
        %s1244 = scalar_select %p1243, %s1242, 63
        %s1245 = smul.addr %s1244, 8
        %s1246 = scalar_lea.vmem %s9, %s1245
      $region68: #{tpu_custom_call.1} parent=63 // pred_fallthru
        _
    $region64: #{tpu_custom_call.1} parent=5 // pred_fallthru
      _
  $region6: #{tpu_custom_call.1} parent=0 // loop_footer
    %s21 = sadd.s32 1, %s17
  $region7: #{tpu_custom_call.1} parent=0 // loop_footer_branch
    %16 = sbr.rel target = $region3
  $region8: #{tpu_custom_call.1} parent=0 // loop_exit
    _

</llo_original>
